<compile_context>
chip_gen: v7x
topology: tpu7x:2x2x1
jax: 0.10.0
libtpu: 0.0.40
codegen_flags: <defaults>
</compile_context>

<pallas_src>
import functools

import jax
import jax.numpy as jnp
from jax.experimental import pallas as pl
from jax.experimental.pallas import tpu as pltpu


# --------------------------------------------------------------------------- #
# Kernel bodies
# --------------------------------------------------------------------------- #
def _rotary_core(x_ref, w2_ref, *, seq_len):
    """Shared fused body.

    x_ref : (M, C) block of the flattened (B*T, C) input (source dtype),
            lanes hold interleaved complex pairs (even = re, odd = im).
    w2_ref: (C, C) bf16 pair-expanded Linear weight (see wrapper).
    Returns (cum_re, cum_im, lin, even); the first three are (M, C) f32 in
    pair-duplicated layout (lanes 2c and 2c+1 both carry channel c's value).
    """
    x = x_ref[...].astype(jnp.float32)
    m, c = x.shape

    # activation: sigmoid(relu(x)) ** 4, in f32
    v = jnp.maximum(x, 0.0)
    s = jax.nn.sigmoid(v)
    s2 = s * s
    y = s2 * s2                                         # interleaved [re, im, ...]

    # Even/odd lane swizzle (XLU roll + parity select): build pair-duplicated
    # real / imag planes so the scan below needs no lane shuffles at all.
    even = (jax.lax.broadcasted_iota(jnp.int32, (m, c), 1) & 1) == 0
    partner = jnp.where(even,
                        pltpu.roll(y, shift=c - 1, axis=1),   # lane l <- l+1
                        pltpu.roll(y, shift=1, axis=1))       # lane l <- l-1
    re = jnp.where(even, y, partner)                    # [re, re] per pair
    im = jnp.where(even, partner, y)                    # [im, im] per pair

    # |z| + eps, then normalize to unit complex numbers.  Approx EUP
    # reciprocal + one Newton refinement: full f32 accuracy, so no drift
    # compounds through the length-T cumulative product.
    scale = jnp.sqrt(re * re + im * im) + 1e-8
    inv = pl.reciprocal(scale, approx=True)
    inv = inv * (2.0 - scale * inv)
    cum_re = re * inv
    cum_im = im * inv

    # Inclusive complex cumprod over time: Hillis-Steele scan, ceil(log2(T))
    # full-block steps.  The block stacks several batch elements along rows;
    # the sublane roll wraps across batch boundaries, but those rows are
    # exactly the ones masked back to the 1 + 0j identity (row % T < d).
    t_idx = jax.lax.broadcasted_iota(jnp.int32, (m, c), 0) % seq_len
    d = 1
    while d < seq_len:
        first = t_idx < d
        sh_re = jnp.where(first, 1.0, pltpu.roll(cum_re, shift=d, axis=0))
        sh_im = jnp.where(first, 0.0, pltpu.roll(cum_im, shift=d, axis=0))
        nxt_re = cum_re * sh_re - cum_im * sh_im
        nxt_im = cum_re * sh_im + cum_im * sh_re
        cum_re, cum_im = nxt_re, nxt_im
        d *= 2

    # bf16 Linear on |z| through the pair-expanded weight: the zero odd rows
    # add exact zeros in the f32 accumulator, so this is exactly the
    # (C/2, C/2) Linear, kept in the pair-duplicated lane layout (and the MXU
    # contraction/output dims are C instead of C/2).
    lin = jnp.dot(scale.astype(jnp.bfloat16), w2_ref[...],
                  preferred_element_type=jnp.float32)
    lin = lin.astype(jnp.bfloat16).astype(jnp.float32)  # torch bf16 Linear parity
    return cum_re, cum_im, lin, even


def _kernel_interleaved(x_ref, w2_ref, o_ref, *, seq_len):
    """reshape=False: full interleaved (re, im) output, stored once, densely."""
    cum_re, cum_im, lin, even = _rotary_core(x_ref, w2_ref, seq_len=seq_len)
    o_ref[...] = (jnp.where(even, cum_re, cum_im) * lin).astype(o_ref.dtype)


def _kernel_real(x_ref, w2_ref, sel_ref, o_ref, *, seq_len):
    """reshape=True: only kv.real is computed/compacted and written to HBM."""
    cum_re, _, lin, _ = _rotary_core(x_ref, w2_ref, seq_len=seq_len)
    full = cum_re * lin                                 # pair-duplicated real part
    # Compact the even lanes with a 0/1 selection matmul on the otherwise idle
    # MXU (output values are O(1); exactness of this last matmul is not
    # critical, so no special precision is requested).
    o_ref[...] = jnp.dot(full, sel_ref[...],
                         preferred_element_type=jnp.float32).astype(o_ref.dtype)


# --------------------------------------------------------------------------- #
# Tiling helpers
# --------------------------------------------------------------------------- #
def _vmem_capacity_bytes():
    try:
        info = pltpu.get_tpu_info()
        cap = getattr(info, "vmem_capacity_bytes", None)
        if cap:
            return int(cap)
    except Exception:
        pass
    return 64 * 1024 * 1024        # conservative: v7x per-TensorCore VMEM


def _pick_batch_tile(B, T, C, out_c, in_bytes, budget_bytes):
    """Largest batch tile that (a) divides B, (b) keeps Bt*T sublane-aligned
    (or covers the whole array), (c) fits the VMEM budget including the
    in-kernel f32 temporaries, and (d) leaves >= 2 grid steps for the two
    v7x TensorCores whenever B >= 2."""
    per_b = T * (2 * C * in_bytes        # pipelined input block, double-buffered
                 + 2 * out_c * 4         # pipelined output block, double-buffered
                 + 10 * C * 4)           # live f32 temporaries in the scan/linear
    bt = max(1, min(B, budget_bytes // max(per_b, 1)))
    if B >= 2:
        bt = min(bt, B // 2)             # >= 2 grid steps: keep both v7x TCs busy
    while bt > 1 and (B % bt or (bt * T) % 8):
        bt -= 1
    if B % bt or ((bt * T) % 8 and bt != B):
        bt = B                           # full-array block is always a legal BlockSpec
    return bt


# --------------------------------------------------------------------------- #
# Public wrapper
# --------------------------------------------------------------------------- #
def rotary_memory(x, weight, *, reshape, batch_tile=None):
    """Pallas implementation of RotaryMemory.forward.

    x:      (B, T, C) real array (any float dtype), C == width, C even; the
            last axis holds interleaved complex pairs (even=re, odd=im).
    weight: (C//2, C//2) bf16 Linear weight (PyTorch (out, in) layout, no bias).
    reshape: True  -> output (B, T, C//2)  (kv.real)
             False -> output (B, T, C)     (view_as_real interleave)
    """
    B, T, C = x.shape
    assert C % 2 == 0
    Ch = C // 2
    out_c = Ch if reshape else C

    # One-time, tiny wrapper-side constants (no per-element HBM glue).
    # Pair-expanded Linear weight: W2[2k, 2j] = W2[2k, 2j+1] = W[j, k], odd
    # rows zero.  Feeding the pair-duplicated |z| through it reproduces the
    # (Ch, Ch) Linear exactly while staying in the interleaved lane layout.
    w_t = weight.T                                      # (in, out)
    w2 = jnp.zeros((C, C), dtype=weight.dtype)
    w2 = w2.at[0::2, 0::2].set(w_t)
    w2 = w2.at[0::2, 1::2].set(w_t)

    # Flatten (B, T) -> rows: a free metadata reshape that keeps every Pallas
    # block 2-D and lets one block carry several batch elements.
    x2d = x.reshape(B * T, C)

    in_bytes = jnp.dtype(x.dtype).itemsize
    vmem_limit = min((_vmem_capacity_bytes() * 3) // 4, 112 * 1024 * 1024)
    Bt = batch_tile if batch_tile is not None else _pick_batch_tile(
        B, T, C, out_c, in_bytes, vmem_limit // 2)
    assert B % Bt == 0
    rows = Bt * T
    grid = (B // Bt,)

    compiler_params = pltpu.CompilerParams(
        dimension_semantics=("parallel",),
        vmem_limit_bytes=vmem_limit,
    )

    if reshape:
        # 0/1 selection matrix picking the even (real) lanes.
        sel = jnp.zeros((C, Ch), jnp.float32)
        sel = sel.at[jnp.arange(0, C, 2), jnp.arange(Ch)].set(1.0)
        out2d = pl.pallas_call(
            functools.partial(_kernel_real, seq_len=T),
            out_shape=jax.ShapeDtypeStruct((B * T, Ch), jnp.float32),
            grid_spec=pltpu.PrefetchScalarGridSpec(
                num_scalar_prefetch=0,
                grid=grid,
                in_specs=[
                    pl.BlockSpec((rows, C), lambda b: (b, 0)),
                    pl.BlockSpec((C, C), lambda b: (0, 0)),
                    pl.BlockSpec((C, Ch), lambda b: (0, 0)),
                ],
                out_specs=pl.BlockSpec((rows, Ch), lambda b: (b, 0)),
            ),
            compiler_params=compiler_params,
        )(x2d, w2, sel)
        return out2d.reshape(B, T, Ch)

    out2d = pl.pallas_call(
        functools.partial(_kernel_interleaved, seq_len=T),
        out_shape=jax.ShapeDtypeStruct((B * T, C), jnp.float32),
        grid_spec=pltpu.PrefetchScalarGridSpec(
            num_scalar_prefetch=0,
            grid=grid,
            in_specs=[
                pl.BlockSpec((rows, C), lambda b: (b, 0)),
                pl.BlockSpec((C, C), lambda b: (0, 0)),
            ],
            out_specs=pl.BlockSpec((rows, C), lambda b: (b, 0)),
        ),
        compiler_params=compiler_params,
    )(x2d, w2)
    return out2d.reshape(B, T, C)


# --------------------------------------------------------------------------- #
# Pure-JAX reference mirroring the PyTorch forward
# --------------------------------------------------------------------------- #
def _reference(x, weight, *, reshape):
    B, T, C = x.shape
    y = x.astype(jnp.float32)
    y = jnp.maximum(y, 0.0)
    y = jax.nn.sigmoid(y) ** 4
    y = y.reshape(B, T, -1, 2)
    cv = jax.lax.complex(y[..., 0], y[..., 1])                 # (B, T, Ch)
    scale = jnp.abs(cv) + 1e-8
    cv2 = cv / scale
    kv = jnp.cumprod(cv2, axis=1)                              # CumProd over T
    lin = jnp.einsum("btk,jk->btj", scale.astype(jnp.bfloat16), weight,
                     preferred_element_type=jnp.float32).astype(jnp.bfloat16)
    kv = kv * lin.astype(jnp.float32)
    if reshape:
        return jnp.real(kv)
    out = jnp.stack([jnp.real(kv), jnp.imag(kv)], axis=-1)
    return out.reshape(B, T, -1)


if __name__ == "__main__":
    # width == height -> reshape branch is False (full interleaved output).
    B, T, width, height = 2, 8, 32, 32
    Ch = width // 2
    reshape_flag = (height != width)

    key = jax.random.PRNGKey(0)
    kx, kw = jax.random.split(key)
    x = jax.random.normal(kx, (B, T, width), dtype=jnp.float32)

    # Deterministic Linear init (PyTorch default: U(-1/sqrt(in), 1/sqrt(in))), bf16.
    bound = 1.0 / (Ch ** 0.5)
    weight = jax.random.uniform(
        kw, (Ch, Ch), minval=-bound, maxval=bound, dtype=jnp.float32
    ).astype(jnp.bfloat16)

    fn = jax.jit(functools.partial(rotary_memory, reshape=reshape_flag))
    out = jax.block_until_ready(fn(x, weight))
    ref = _reference(x, weight, reshape=reshape_flag)
    assert out.shape == ref.shape and out.dtype == jnp.float32
    assert jnp.allclose(out, ref, rtol=2e-2, atol=2e-2), "mismatch vs reference"

    # Also exercise the reshape=True branch (height != width case).
    fn2 = jax.jit(functools.partial(rotary_memory, reshape=True))
    out2 = jax.block_until_ready(fn2(x, weight))
    ref2 = _reference(x, weight, reshape=True)
    assert out2.shape == ref2.shape
    assert jnp.allclose(out2, ref2, rtol=2e-2, atol=2e-2), "mismatch (reshape=True)"

    print("KERNEL_OK")
</pallas_src>

<mosaic_0001>
module attributes {stable_mosaic.version = 11 : i64} {
  func.func @_kernel_interleaved(%arg0: i32, %arg1: memref<8x32xf32, #tpu.memory_space<vmem>>, %arg2: memref<32x32xbf16, #tpu.memory_space<vmem>>, %arg3: memref<8x32xf32, #tpu.memory_space<vmem>>) attributes {dimension_semantics = [#tpu.dimension_semantics<parallel>], iteration_bounds = array<i64: 2>, scalar_prefetch = 0 : i64, scratch_operands = 0 : i64, tpu.core_type = #tpu.core_type<tc>, window_params = [{transform_indices = @transform_0, window_bounds = array<i64: 8, 32>}, {pipeline_mode = #tpu.pipeline_mode<synchronous>, transform_indices = @transform_1, window_bounds = array<i64: 32, 32>}, {transform_indices = @transform_2, window_bounds = array<i64: 8, 32>}]} {
    %c0 = arith.constant 0 : index
    %c0_0 = arith.constant 0 : index
    %0 = vector.load %arg1[%c0, %c0_0] : memref<8x32xf32, #tpu.memory_space<vmem>>, vector<8x32xf32>
    %cst = arith.constant 0.000000e+00 : f32
    %1 = vector.broadcast %cst : f32 to vector<8x32xf32>
    %2 = arith.maximumf %0, %1 : vector<8x32xf32>
    %3 = arith.negf %2 : vector<8x32xf32>
    %4 = math.exp %3 : vector<8x32xf32>
    %cst_1 = arith.constant 1.000000e+00 : f32
    %5 = vector.broadcast %cst_1 : f32 to vector<8x32xf32>
    %6 = arith.addf %5, %4 : vector<8x32xf32>
    %7 = arith.divf %5, %6 : vector<8x32xf32>
    %8 = arith.mulf %7, %7 : vector<8x32xf32>
    %9 = arith.mulf %8, %8 : vector<8x32xf32>
    %10 = tpu.iota {dimensions = array<i32: 1>} : vector<8x32xi32>
    %c1_i32 = arith.constant 1 : i32
    %11 = vector.broadcast %c1_i32 : i32 to vector<8x32xi32>
    %12 = arith.andi %10, %11 : vector<8x32xi32>
    %c0_i32 = arith.constant 0 : i32
    %13 = vector.broadcast %c0_i32 : i32 to vector<8x32xi32>
    %14 = arith.cmpi eq, %12, %13 : vector<8x32xi32>
    %c31_i32 = arith.constant 31 : i32
    %15 = tpu.dynamic_rotate %9 by %c31_i32 dim 1 : vector<8x32xf32>, i32 -> vector<8x32xf32>
    %c1_i32_2 = arith.constant 1 : i32
    %16 = tpu.dynamic_rotate %9 by %c1_i32_2 dim 1 : vector<8x32xf32>, i32 -> vector<8x32xf32>
    %17 = arith.select %14, %15, %16 : vector<8x32xi1>, vector<8x32xf32>
    %18 = arith.select %14, %9, %17 : vector<8x32xi1>, vector<8x32xf32>
    %19 = arith.select %14, %17, %9 : vector<8x32xi1>, vector<8x32xf32>
    %20 = arith.mulf %18, %18 : vector<8x32xf32>
    %21 = arith.mulf %19, %19 : vector<8x32xf32>
    %22 = arith.addf %20, %21 : vector<8x32xf32>
    %23 = math.sqrt %22 : vector<8x32xf32>
    %cst_3 = arith.constant 9.99999993E-9 : f32
    %24 = vector.broadcast %cst_3 : f32 to vector<8x32xf32>
    %25 = arith.addf %23, %24 : vector<8x32xf32>
    %26 = tpu.reciprocal %25 {approx = true} : vector<8x32xf32> -> vector<8x32xf32>
    %27 = arith.mulf %25, %26 : vector<8x32xf32>
    %cst_4 = arith.constant 2.000000e+00 : f32
    %28 = vector.broadcast %cst_4 : f32 to vector<8x32xf32>
    %29 = arith.subf %28, %27 : vector<8x32xf32>
    %30 = arith.mulf %26, %29 : vector<8x32xf32>
    %31 = arith.mulf %18, %30 : vector<8x32xf32>
    %32 = arith.mulf %19, %30 : vector<8x32xf32>
    %33 = tpu.iota {dimensions = array<i32: 0>} : vector<8x32xi32>
    %c8_i32 = arith.constant 8 : i32
    %c0_i32_5 = arith.constant 0 : i32
    %34 = arith.cmpi eq, %c8_i32, %c0_i32_5 : i32
    %c1_i32_6 = arith.constant 1 : i32
    %35 = arith.select %34, %c1_i32_6, %c8_i32 : i32
    %36 = vector.broadcast %35 : i32 to vector<8x32xi32>
    %37 = arith.remsi %33, %36 : vector<8x32xi32>
    %c0_i32_7 = arith.constant 0 : i32
    %38 = vector.broadcast %c0_i32_7 : i32 to vector<8x32xi32>
    %39 = arith.cmpi ne, %37, %38 : vector<8x32xi32>
    %c0_i32_8 = arith.constant 0 : i32
    %40 = vector.broadcast %c0_i32_8 : i32 to vector<8x32xi32>
    %41 = arith.cmpi slt, %37, %40 : vector<8x32xi32>
    %c0_i32_9 = arith.constant 0 : i32
    %42 = arith.cmpi slt, %35, %c0_i32_9 : i32
    %43 = vector.broadcast %42 : i1 to vector<8x32xi1>
    %44 = vector.broadcast %43 : vector<8x32xi1> to vector<8x32xi1>
    %45 = arith.xori %41, %44 : vector<8x32xi1>
    %46 = arith.andi %45, %39 : vector<8x32xi1>
    %47 = vector.broadcast %35 : i32 to vector<8x32xi32>
    %48 = arith.addi %37, %47 : vector<8x32xi32>
    %49 = arith.select %46, %48, %37 : vector<8x32xi1>, vector<8x32xi32>
    %c1_i32_10 = arith.constant 1 : i32
    %50 = vector.broadcast %c1_i32_10 : i32 to vector<8x32xi32>
    %51 = arith.cmpi slt, %49, %50 : vector<8x32xi32>
    %c1_i32_11 = arith.constant 1 : i32
    %52 = tpu.dynamic_rotate %31 by %c1_i32_11 dim 0 : vector<8x32xf32>, i32 -> vector<8x32xf32>
    %cst_12 = arith.constant 1.000000e+00 : f32
    %53 = vector.broadcast %cst_12 : f32 to vector<8x32xf32>
    %54 = arith.select %51, %53, %52 : vector<8x32xi1>, vector<8x32xf32>
    %c1_i32_13 = arith.constant 1 : i32
    %55 = tpu.dynamic_rotate %32 by %c1_i32_13 dim 0 : vector<8x32xf32>, i32 -> vector<8x32xf32>
    %cst_14 = arith.constant 0.000000e+00 : f32
    %56 = vector.broadcast %cst_14 : f32 to vector<8x32xf32>
    %57 = arith.select %51, %56, %55 : vector<8x32xi1>, vector<8x32xf32>
    %58 = arith.mulf %31, %54 : vector<8x32xf32>
    %59 = arith.mulf %32, %57 : vector<8x32xf32>
    %60 = arith.subf %58, %59 : vector<8x32xf32>
    %61 = arith.mulf %31, %57 : vector<8x32xf32>
    %62 = arith.mulf %32, %54 : vector<8x32xf32>
    %63 = arith.addf %61, %62 : vector<8x32xf32>
    %c2_i32 = arith.constant 2 : i32
    %64 = vector.broadcast %c2_i32 : i32 to vector<8x32xi32>
    %65 = arith.cmpi slt, %49, %64 : vector<8x32xi32>
    %c2_i32_15 = arith.constant 2 : i32
    %66 = tpu.dynamic_rotate %60 by %c2_i32_15 dim 0 : vector<8x32xf32>, i32 -> vector<8x32xf32>
    %cst_16 = arith.constant 1.000000e+00 : f32
    %67 = vector.broadcast %cst_16 : f32 to vector<8x32xf32>
    %68 = arith.select %65, %67, %66 : vector<8x32xi1>, vector<8x32xf32>
    %c2_i32_17 = arith.constant 2 : i32
    %69 = tpu.dynamic_rotate %63 by %c2_i32_17 dim 0 : vector<8x32xf32>, i32 -> vector<8x32xf32>
    %cst_18 = arith.constant 0.000000e+00 : f32
    %70 = vector.broadcast %cst_18 : f32 to vector<8x32xf32>
    %71 = arith.select %65, %70, %69 : vector<8x32xi1>, vector<8x32xf32>
    %72 = arith.mulf %60, %68 : vector<8x32xf32>
    %73 = arith.mulf %63, %71 : vector<8x32xf32>
    %74 = arith.subf %72, %73 : vector<8x32xf32>
    %75 = arith.mulf %60, %71 : vector<8x32xf32>
    %76 = arith.mulf %63, %68 : vector<8x32xf32>
    %77 = arith.addf %75, %76 : vector<8x32xf32>
    %c4_i32 = arith.constant 4 : i32
    %78 = vector.broadcast %c4_i32 : i32 to vector<8x32xi32>
    %79 = arith.cmpi slt, %49, %78 : vector<8x32xi32>
    %c4_i32_19 = arith.constant 4 : i32
    %80 = tpu.dynamic_rotate %74 by %c4_i32_19 dim 0 : vector<8x32xf32>, i32 -> vector<8x32xf32>
    %cst_20 = arith.constant 1.000000e+00 : f32
    %81 = vector.broadcast %cst_20 : f32 to vector<8x32xf32>
    %82 = arith.select %79, %81, %80 : vector<8x32xi1>, vector<8x32xf32>
    %c4_i32_21 = arith.constant 4 : i32
    %83 = tpu.dynamic_rotate %77 by %c4_i32_21 dim 0 : vector<8x32xf32>, i32 -> vector<8x32xf32>
    %cst_22 = arith.constant 0.000000e+00 : f32
    %84 = vector.broadcast %cst_22 : f32 to vector<8x32xf32>
    %85 = arith.select %79, %84, %83 : vector<8x32xi1>, vector<8x32xf32>
    %86 = arith.mulf %74, %82 : vector<8x32xf32>
    %87 = arith.mulf %77, %85 : vector<8x32xf32>
    %88 = arith.subf %86, %87 : vector<8x32xf32>
    %89 = arith.mulf %74, %85 : vector<8x32xf32>
    %90 = arith.mulf %77, %82 : vector<8x32xf32>
    %91 = arith.addf %89, %90 : vector<8x32xf32>
    %92 = arith.truncf %25 : vector<8x32xf32> to vector<8x32xbf16>
    %c0_23 = arith.constant 0 : index
    %c0_24 = arith.constant 0 : index
    %93 = vector.load %arg2[%c0_23, %c0_24] : memref<32x32xbf16, #tpu.memory_space<vmem>>, vector<32x32xbf16>
    %cst_25 = arith.constant dense<0.000000e+00> : vector<8x32xf32>
    %94 = tpu.matmul %92, %93, %cst_25 {dimension_numbers = #tpu.dot_dimension_numbers<[1], [0], [0], [1], [0, 0, 1, 1], [], []>} : vector<8x32xbf16>, vector<32x32xbf16>, vector<8x32xf32> -> vector<8x32xf32>
    %95 = arith.truncf %94 : vector<8x32xf32> to vector<8x32xbf16>
    %96 = arith.extf %95 : vector<8x32xbf16> to vector<8x32xf32>
    %97 = arith.select %14, %88, %91 : vector<8x32xi1>, vector<8x32xf32>
    %98 = arith.mulf %97, %96 : vector<8x32xf32>
    %c0_26 = arith.constant 0 : index
    %c0_27 = arith.constant 0 : index
    %99 = vector.load %arg3[%c0_26, %c0_27] : memref<8x32xf32, #tpu.memory_space<vmem>>, vector<8x32xf32>
    tpu.vector_store %arg3[%c0_26, %c0_27], %98 {strides = array<i32>} : memref<8x32xf32, #tpu.memory_space<vmem>>, vector<8x32xf32>,
    return
  }
  func.func @transform_0(%arg0: i32) -> (i32, i32) {
    %c0_i32 = arith.constant 0 : i32
    %c0_i32_0 = arith.constant 0 : i32
    return %arg0, %c0_i32 : i32, i32
  }
  func.func @transform_1(%arg0: i32) -> (i32, i32) {
    %c0_i32 = arith.constant 0 : i32
    %c0_i32_0 = arith.constant 0 : i32
    %c0_i32_1 = arith.constant 0 : i32
    return %c0_i32, %c0_i32_0 : i32, i32
  }
  func.func @transform_2(%arg0: i32) -> (i32, i32) {
    %c0_i32 = arith.constant 0 : i32
    %c0_i32_0 = arith.constant 0 : i32
    return %arg0, %c0_i32 : i32, i32
  }
}

</mosaic_0001>

<llo_original>
// kernel: rotary_memory.1
$region0: #{rotary_memory.1}
  #allocation0 [shape = 'u32[]', space=smem, size = 0x4, offset = 0x4, fixed_abs, tag = 'smem constant byte address 0x4 - core index']
  #allocation1 [shape = 'u32[144,128]{1,0:T(1,128)}', space=vmem, size = 0x12000, scoped, tag = 'internal scratch']
  %s0 = inlined_call_operand.vmem [shape: f32[16,32], index: 0, kind: input, shape index: {}]
  %s1 = inlined_call_operand.vmem [shape: bf16[32,32], index: 1, kind: input, shape index: {}]
  %s2 = inlined_call_operand.hbm [shape: f32[16,32], index: 2, kind: output, shape index: {}]
  %s3 = sld [smem:[#allocation0]]
  $region41: #{rotary_memory.1} parent=0
    _
  %s5 = ssub.s32 1, %s3
  %s6 = scalar_select 0, %s5, %s3
  $region1: #{rotary_memory.1} parent=0
    #allocation2 [shape = 'u8[8192]{0}', space=vmem, size = 0x2000, scoped, tag = 'output window, operand 0']
    #allocation3 [shape = 's32[2]{0}', space=sflag, size = 0x8, scoped, tag = 'scoped memory for rotary_memory.1']
    %7 = vsyncpa [#allocation3], 0
    %s8 = scalar_lea.sflag [#allocation3], 1
    %9 = vsyncpa %s8, 0
    loop: start=0, step=1, limit=4
    $region2: #{rotary_memory.1} parent=1 // loop_pre_header
      _
    $region3: #{rotary_memory.1} parent=1 // loop_header
      %s11 = sphi 0, %s15
      %p12 = scmp.ge.s32.totalorder %s11, 4
      %s21 = sphi 0, %s23
      %s24 = sphi 0, %s21
      %s25 = sphi 0, %s24
      %s41 = sphi 0, %s25
      %s45 = sphi 0, %s45
      %s47 = sphi 0, %s45
      %s48 = sphi 0, %s47
      %s62 = sphi 0, %s48
      %s68 = sphi 0, %s70
      %s71 = sphi 0, %s68
      %s72 = sphi 0, %s71
      %s88 = sphi 0, %s72
    $region4: #{rotary_memory.1} parent=1 // loop_header_branch
      %14 = sbr.rel (%p12) target = $region8
    $region5: #{rotary_memory.1} parent=1 // loop_body
      %s16 = ssub.s32 %s11, 1
      %s17 = ssub.s32 %s11, 2
      %s18 = sadd.s32 %s11, 1
      %s19 = ssub.s32 %s11, %s18
      %p20 = scmp.eq.s32.totalorder %s19, 0
      %s22 = sadd.s32 %s21, 1
      %s23 = scalar_select %p20, %s21, %s22
      %p26 = pneg %p20
      %p27 = scmp.eq.s32.totalorder %s11, 1
      %p28 = por %p26, %p27
      %p29 = scmp.ne.s32.totalorder %s21, %s24
      %p30 = scmp.eq.s32.totalorder %s11, 0
      %p31 = por %p29, %p30
      %p32 = scmp.ne.s32.totalorder %s21, %s24
      %p33 = scmp.eq.s32.totalorder %s16, 1
      %p34 = por %p32, %p33
      %p35 = scmp.ne.s32.totalorder %s24, %s25
      %p36 = scmp.eq.s32.totalorder %s16, 0
      %p37 = por %p35, %p36
      %p38 = scmp.ne.s32.totalorder %s24, %s25
      %p39 = scmp.eq.s32.totalorder %s17, 1
      %p40 = por %p38, %p39
      %p42 = scmp.ne.s32.totalorder %s25, %s41
      %p43 = scmp.eq.s32.totalorder %s17, 0
      %p44 = por %p42, %p43
      %s46 = sadd.s32 %s45, 1
      %p49 = scmp.eq.s32.totalorder %s11, 1
      %p50 = scmp.ne.s32.totalorder %s45, %s47
      %p51 = scmp.eq.s32.totalorder %s11, 0
      %p52 = por %p50, %p51
      %p53 = scmp.ne.s32.totalorder %s45, %s47
      %p54 = scmp.eq.s32.totalorder %s16, 1
      %p55 = por %p53, %p54
      %p56 = scmp.ne.s32.totalorder %s47, %s48
      %p57 = scmp.eq.s32.totalorder %s16, 0
      %p58 = por %p56, %p57
      %p59 = scmp.ne.s32.totalorder %s47, %s48
      %p60 = scmp.eq.s32.totalorder %s17, 1
      %p61 = por %p59, %p60
      %p63 = scmp.ne.s32.totalorder %s48, %s62
      %p64 = scmp.eq.s32.totalorder %s17, 0
      %p65 = por %p63, %p64
      %s66 = ssub.s32 %s11, %s18
      %p67 = scmp.eq.s32.totalorder %s66, 0
      %s69 = sadd.s32 %s68, 1
      %s70 = scalar_select %p67, %s68, %s69
      %p73 = pneg %p67
      %p74 = scmp.eq.s32.totalorder %s11, 1
      %p75 = por %p73, %p74
      %p76 = scmp.ne.s32.totalorder %s68, %s71
      %p77 = scmp.eq.s32.totalorder %s11, 0
      %p78 = por %p76, %p77
      %p79 = scmp.ne.s32.totalorder %s68, %s71
      %p80 = scmp.eq.s32.totalorder %s16, 1
      %p81 = por %p79, %p80
      %p82 = scmp.ne.s32.totalorder %s71, %s72
      %p83 = scmp.eq.s32.totalorder %s16, 0
      %p84 = por %p82, %p83
      %p85 = scmp.ne.s32.totalorder %s71, %s72
      %p86 = scmp.eq.s32.totalorder %s17, 1
      %p87 = por %p85, %p86
      %p89 = scmp.ne.s32.totalorder %s72, %s88
      %p90 = scmp.eq.s32.totalorder %s17, 0
      %p91 = por %p89, %p90
      %p92 = scmp.le.s32.totalorder 1, %s11
      %p93 = scmp.lt.s32.totalorder %s11, 3
      %p94 = pnand %p92, %p93
      %p95 = pneg %p94
      // Predicated region
      $region9: #{rotary_memory.1} parent=5 // pred_check
        _
      $region10: #{rotary_memory.1} parent=5 // pred_check_branch
        %97 = sbr.rel (%p94) target = $region12
      $region11: #{rotary_memory.1} parent=5 // pred_region
        %s98 = ssub.s32 %s11, 1
        // Predicated region
        $region13: #{rotary_memory.1} parent=11 // pred_check
          %p99 = pneg %p58
        $region14: #{rotary_memory.1} parent=11 // pred_check_branch
          %101 = sbr.rel (%p99) target = $region16
        $region15: #{rotary_memory.1} parent=11 // pred_region
          _
        $region16: #{rotary_memory.1} parent=11 // pred_fallthru
          _
      $region12: #{rotary_memory.1} parent=5 // pred_fallthru
        _
      %p102 = scmp.lt.s32.totalorder %s11, 2
      // Predicated region
      $region17: #{rotary_memory.1} parent=5 // pred_check
        %p103 = pneg %p102
      $region18: #{rotary_memory.1} parent=5 // pred_check_branch
        %105 = sbr.rel (%p103) target = $region20
      $region19: #{rotary_memory.1} parent=5 // pred_region
        // Predicated region
        $region21: #{rotary_memory.1} parent=19 // pred_check
          %p106 = pneg %p31
        $region22: #{rotary_memory.1} parent=19 // pred_check_branch
          %108 = sbr.rel (%p106) target = $region24
        $region23: #{rotary_memory.1} parent=19 // pred_region
          %p109 = scmp.lt.s32.totalorder %s11, 1
          %s110 = scalar_select %p109, %s11, 1
          %s111 = smul.addr %s110, 8
          %s112 = scalar_lea.vmem %s0, %s111
        $region24: #{rotary_memory.1} parent=19 // pred_fallthru
          _
      $region20: #{rotary_memory.1} parent=5 // pred_fallthru
        _
      %p113 = scmp.le.s32.totalorder 1, %s11
      %p114 = scmp.lt.s32.totalorder %s11, 3
      %p115 = pnand %p113, %p114
      %p116 = pneg %p115
      // Predicated region
      $region25: #{rotary_memory.1} parent=5 // pred_check
        _
      $region26: #{rotary_memory.1} parent=5 // pred_check_branch
        %118 = sbr.rel (%p115) target = $region28
      $region27: #{rotary_memory.1} parent=5 // pred_region
        %s119 = ssub.s32 %s11, 1
        %p120 = scmp.lt.s32.totalorder %s16, 1
        %s121 = scalar_select %p120, %s16, 1
        %s122 = smul.addr %s121, 8
        %s123 = scalar_lea.vmem %s0, %s122
        %p124 = pneg %p37
        %p125 = pneg %p34
        %p126 = pneg %p58
        %p127 = pneg %p55
        %p128 = pneg %p84
        %p129 = pneg %p81
        %s130 = sand.u32 %s71, 1
        %s131 = scalar_lea.sflag [#allocation3], %s130
        %s132 = sand.u32 %s71, 1
        %s133 = smul.addr %s132, 8
        %s134 = scalar_lea.vmem [#allocation2], %s133
        %p135 = scmp.lt.s32.totalorder %s16, 1
        %s136 = scalar_select %p135, %s16, 1
        %s137 = smul.addr %s136, 8
        %s138 = scalar_lea.vmem %s0, %s137
        %v140 = vld [vmem:[%s138] sm:$0xff]
        %v141 = vmax.f32 %v140, 0.0
        %v142 = vxor.u32 %v141, 2147483648
        %v143 = vmul.f32 %v142, 1.442695
        %v144 = vpow.pop %v143
        %v145 = vadd.f32 %v144, 1.0
        %v146 = vrcp.pop %v145
        %v147 = vmul.f32 1.0, %v146
        %v148 = vmul.f32 %v147, %v147
        %v149 = vmul.f32 %v148, %v148
        %v150 = vlaneseq
        %v151 = vand.u32 %v150, 127
        %v152 = vand.u32 %v151, 1
        %vm153 = vcmp.eq.s32.totalorder %v152, 0
        %vm154 = vcmask 1047808
        %155 = vrot.lane.b32.xlu0 %v149, 32
        %v156 = vpop.permute.xlu0 %155
        %v157 = vsel %vm154, %v156, %v149
        %158 = vrot.lane.b32.xlu0 %v157, 32
        %v159 = vpop.permute.xlu0 %158
        %v160 = vsel %vm154, %v159, %v149
        %162 = vrot.lane.b32.xlu0 %v160, 97
        %v163 = vpop.permute.xlu0 %162
        %v165 = vsel %vm153, %v149, %v163
        %166 = vrot.lane.b32.xlu0 %v160, 127
        %v167 = vpop.permute.xlu0 %166
        %v169 = vsel %vm153, %v167, %v149
        %v170 = vmul.f32 %v165, %v165
        %v171 = vmul.f32 %v169, %v169
        %v172 = vadd.f32 %v170, %v171
        %v173 = vrsqrt.pop %v172
        %v174 = vmul.f32 %v172, %v173
        %vm175 = vcmp.eq.f32.partialorder %v172, inf
        %v176 = vsel %vm175, %v172, %v174
        %vm177 = vcmp.eq.f32.partialorder %v172, 0.0
        %v178 = vand.u32 %v172, 2147483648
        %v179 = vsel %vm177, %v178, %v176
        %v180 = vadd.f32 %v179, 1e-08
        %v181 = vrcp.pop %v180
        %v182 = vmul.f32 %v180, %v181
        %v183 = vsub.f32 2.0, %v182
        %v184 = vmul.f32 %v181, %v183
        %v185 = vmul.f32 %v165, %v184
        %v186 = vmul.f32 %v169, %v184
        %v187 = vlaneseq
        %v188 = vshrl.u32 %v187, 7
        %vm189 = vcmp.lt.s32.totalorder %v188, 0
        %v190 = vsub.s32 0, %v188
        %v191 = vsel %vm189, %v190, %v188
        %v192 = vshrl.u32 %v191, 3
        %v193 = vand.u32 %v191, 7
        %v194 = vsub.s32 0, %v193
        %v195 = vsel %vm189, %v194, %v193
        %vm196 = vcmp.ne.s32.totalorder %v195, 0
        %vm197 = vcmp.lt.s32.totalorder %v195, 0
        %vm198 = vmand %vm197, %vm196
        %v199 = vadd.s32 %v195, 8
        %v200 = vsel %vm198, %v199, %v195
        %vm201 = vcmp.lt.s32.totalorder %v200, 1
        %v202 = vrot.slane %v185, 7
        %v203 = vsel %vm201, 1.0, %v202
        %v204 = vrot.slane %v186, 7
        %v205 = vsel %vm201, 0.0, %v204
        %v206 = vmul.f32 %v185, %v203
        %v207 = vmul.f32 %v186, %v205
        %v208 = vsub.f32 %v206, %v207
        %v209 = vmul.f32 %v185, %v205
        %v210 = vmul.f32 %v186, %v203
        %v211 = vadd.f32 %v209, %v210
        %vm212 = vcmp.lt.s32.totalorder %v200, 2
        %v213 = vrot.slane %v208, 6
        %v214 = vsel %vm212, 1.0, %v213
        %v215 = vrot.slane %v211, 6
        %v216 = vsel %vm212, 0.0, %v215
        %v217 = vmul.f32 %v208, %v214
        %v218 = vmul.f32 %v211, %v216
        %v219 = vsub.f32 %v217, %v218
        %v220 = vmul.f32 %v208, %v216
        %v221 = vmul.f32 %v211, %v214
        %v222 = vadd.f32 %v220, %v221
        %vm223 = vcmp.lt.s32.totalorder %v200, 4
        %v224 = vrot.slane %v219, 4
        %v225 = vsel %vm223, 1.0, %v224
        %v226 = vrot.slane %v222, 4
        %v227 = vsel %vm223, 0.0, %v226
        %v228 = vmul.f32 %v219, %v225
        %v229 = vmul.f32 %v222, %v227
        %v230 = vsub.f32 %v228, %v229
        %v231 = vmul.f32 %v219, %v227
        %v232 = vmul.f32 %v222, %v225
        %v233 = vadd.f32 %v231, %v232
        %v234 = vpack.c.bf16 %v180, %v180
        %v235 = vld [vmem:[%s1] sm:$0xf]
        %v236 = vld [vmem:[%s1 + $0x4] sm:$0xf]
        %v237 = vld [vmem:[%s1 + $0x8] sm:$0xf]
        %v238 = vld [vmem:[%s1 + $0xc] sm:$0xf]
        %v243 = vunpack.c.l.b16 %v235
        %v244 = vunpack.c.l.b16 %v236
        %v245 = vunpack.c.l.b16 %v237
        %v246 = vunpack.c.l.b16 %v238
        %v247 = vpack.c.b16 %v244, %v243
        %v248 = vpack.c.b16 %v246, %v245
        %vm251 = vcmask 261120
        %v253 = vsel %vm251, %v234, 0
        %255 = vmatprep.subr.bf16.mxu0 0
        %256 = vmatpush1.bf16.msra.mxu0 %v247
        %257 = vmatprep.subr.bf16.mxu0 0
        %258 = vmatpush1.bf16.msra.mxu0 %v248
        %259 = vmatprep.subr.bf16.mxu0 0
        %260 = vmatpush1.bf16.msra.mxu0 0
        %261 = vmatprep.subr.bf16.mxu0 0
        %262 = vmatpush1.bf16.msra.mxu0 0
        %263 = vmatprep.subr.bf16.mxu0 0
        %264 = vmatpush1.bf16.msra.mxu0 0
        %265 = vmatprep.subr.bf16.mxu0 0
        %266 = vmatpush1.bf16.msra.mxu0 0
        %267 = vmatprep.subr.bf16.mxu0 0
        %268 = vmatpush1.bf16.msra.mxu0 0
        %269 = vmatprep.subr.bf16.mxu0 0
        %270 = vmatpush1.bf16.msra.mxu0 0
        %271 = vmatprep.subr.bf16.mxu0 0
        %272 = vmatpush1.bf16.msra.mxu0 0
        %273 = vmatprep.subr.bf16.mxu0 0
        %274 = vmatpush1.bf16.msra.mxu0 0
        %275 = vmatprep.subr.bf16.mxu0 0
        %276 = vmatpush1.bf16.msra.mxu0 0
        %277 = vmatprep.subr.bf16.mxu0 0
        %278 = vmatpush1.bf16.msra.mxu0 0
        %279 = vmatprep.subr.bf16.mxu0 0
        %280 = vmatpush1.bf16.msra.mxu0 0
        %281 = vmatprep.subr.bf16.mxu0 0
        %282 = vmatpush1.bf16.msra.mxu0 0
        %283 = vmatprep.subr.bf16.mxu0 0
        %284 = vmatpush1.bf16.msra.mxu0 0
        %285 = vmatprep.subr.bf16.mxu0 0
        %286 = vmatpush1.bf16.msra.mxu0 0
        %287 = vmatprep.mubr.bf16.mxu0 0
        %288 = vmatmul.mubr.bf16.gmra.mrb[0].mxu0 %v253
        %v289 = vpop.f32.mrb[0].mxu0
        %v290 = vadd.f32 0.0, %v289
        %v291 = vpop.f32.mrb[0].mxu0
        %v292 = vpop.f32.mrb[0].mxu0
        %v293 = vpop.f32.mrb[0].mxu0
        %294 = vdwg.mxu0
        %v295 = vpack.c.bf16 %v290, %v290
        %v296 = vunpack.c.l.bf16 %v295
        %v297 = vsel %vm153, %v230, %v233
        %v298 = vmul.f32 %v297, %v296
        %299 = vst.msk [vmem:[%s134] sm:$0xff] %vm251, %v298
        %s300 = sand.u32 %s71, 1
        %s301 = scalar_lea.sflag [#allocation3], %s300
        %s302 = sand.u32 %s71, 1
        %s303 = smul.addr %s302, 8
        %s304 = scalar_lea.vmem [#allocation2], %s303
        // Predicated region
        $region29: #{rotary_memory.1} parent=27 // pred_check
          %p305 = pneg %p81
        $region30: #{rotary_memory.1} parent=27 // pred_check_branch
          %307 = sbr.rel (%p305) target = $region32
        $region31: #{rotary_memory.1} parent=27 // pred_region
          %s309 = ssub.s32 128, 128
          %310 = vsyncadd %s301, %s309
          %s311 = smul.addr %s16, 128
          %s312 = scalar_lea.hbm %s2, %s311
          %s314 = sshll.u32 %s304, 4
          %s315 = int_to_ptr.vmem [resolvable:$true] %s314
          %317 = dma.vmem_to_hbm [thread:$0]  %s315, 128, %s312, %s301
        $region32: #{rotary_memory.1} parent=27 // pred_fallthru
          _
      $region28: #{rotary_memory.1} parent=5 // pred_fallthru
        _
      %p318 = scmp.le.s32.totalorder 2, %s11
      // Predicated region
      $region33: #{rotary_memory.1} parent=5 // pred_check
        %p319 = pneg %p318
      $region34: #{rotary_memory.1} parent=5 // pred_check_branch
        %321 = sbr.rel (%p319) target = $region36
      $region35: #{rotary_memory.1} parent=5 // pred_region
        %s322 = ssub.s32 %s11, 2
        // Predicated region
        $region37: #{rotary_memory.1} parent=35 // pred_check
          %p323 = pneg %p87
        $region38: #{rotary_memory.1} parent=35 // pred_check_branch
          %325 = sbr.rel (%p323) target = $region40
        $region39: #{rotary_memory.1} parent=35 // pred_region
          %s326 = sand.u32 %s72, 1
          %s327 = scalar_lea.sflag [#allocation3], %s326
          %s328 = sand.u32 %s72, 1
          %s329 = smul.addr %s328, 8
          %s330 = scalar_lea.vmem [#allocation2], %s329
          %331 = dma.done %s327, 128
        $region40: #{rotary_memory.1} parent=35 // pred_fallthru
          _
      $region36: #{rotary_memory.1} parent=5 // pred_fallthru
        _
    $region6: #{rotary_memory.1} parent=1 // loop_footer
      %s15 = sadd.s32 1, %s11
    $region7: #{rotary_memory.1} parent=1 // loop_footer_branch
      %10 = sbr.rel target = $region3
    $region8: #{rotary_memory.1} parent=1 // loop_exit
      _
    %332 = vsyncpa [#allocation3], 1
    %s333 = scalar_lea.sflag [#allocation3], 1
    %334 = vsyncpa %s333, 1

</llo_original>
